<compile_context>
chip_gen: v7x
topology: tpu7x:2x2x1
jax: 0.10.0
libtpu: 0.0.40
codegen_flags: <defaults>
</compile_context>

<pallas_src>
import jax
import jax.numpy as jnp
from jax.experimental import pallas as pl
from jax.experimental.pallas import tpu as pltpu


def _round_up(x: int, m: int) -> int:
    return ((x + m - 1) // m) * m


def toynet_kernel(x_ref, w1_ref, b1_ref, w2_ref, b2_ref, o_ref):
    # nn.Flatten() is a free reshape in the wrapper.
    # nn.ReLU(inplace=True) on the raw pixels, done in f32 (cheapest order on
    # v5e, which has no bf16 VPU), then a single cast to the MXU dtype.
    x = jnp.maximum(x_ref[...], 0.0).astype(w1_ref.dtype)
    # Linear(784 -> 120): MXU matmul, f32 accumulation, exact f32 bias add.
    # (Hidden dim is zero-padded 120 -> 128 lanes; zero columns are a no-op.)
    h = jnp.dot(x, w1_ref[...], preferred_element_type=jnp.float32) + b1_ref[...]
    # nn.ReLU(inplace=True)
    h = jnp.maximum(h, 0.0).astype(w2_ref.dtype)
    # Linear(120 -> num_classes) into the zero-padded 128-lane class dim.
    o = jnp.dot(h, w2_ref[...], preferred_element_type=jnp.float32) + b2_ref[...]
    o_ref[...] = o.astype(o_ref.dtype)


def toynet_forward(x_nchw, w1, b1, w2, b2, *, block_batch=2048,
                   compute_dtype=jnp.bfloat16, out_dtype=jnp.float32):
    """ToyNet forward.

    x_nchw: (B, 1, 28, 28) float32 (PyTorch NCHW layout).
    w1: (784, 120), b1: (120,), w2: (120, C), b2: (C,)  (W stored input-major,
    i.e. the transpose of PyTorch's nn.Linear.weight).
    Returns (B, C) logits in `out_dtype` (float32 by default).

    Set compute_dtype=jnp.float32 for exact PyTorch f32 parity; the kernel is
    memory-bound, so the extra MXU passes are essentially free.
    """
    B = x_nchw.shape[0]
    D, H = w1.shape                      # 784, 120
    C = w2.shape[1]                      # num_classes
    assert w2.shape[0] == H and b1.shape == (H,) and b2.shape == (C,)

    # Lane-pad hidden (120 -> 128) and class (C -> 128) dims with zeros: zero
    # columns/rows contribute nothing, so real logits are unchanged, and the
    # stores / second matmul become full-vreg, lane-dense ops.
    H_pad = _round_up(H, 128)
    C_pad = _round_up(C, 128)

    # Batch tile.  Large batches: a big fixed tile amortizes the ~0.35 us/step
    # grid overhead and sits near the HBM roofline.  Small/medium batches:
    # split into two tiles when big enough so v7x's two TensorCores both get a
    # tile on the "parallel" axis.  Always a multiple of 8 sublanes; the last
    # block may be partial (rows independent, no batch reduction -> safe).
    if B > block_batch:
        TB = block_batch
    elif B > 16:
        TB = _round_up(pl.cdiv(B, 2), 8)
    else:
        TB = _round_up(max(B, 1), 8)
    n_tiles = pl.cdiv(B, TB)

    # nn.Flatten (row-major on NCHW, identical to PyTorch).  Metadata-only
    # reshape: the f32 pixels stream straight from HBM into the kernel; the
    # bf16 cast happens in-kernel, not in a separate XLA pass.
    x_flat = x_nchw.reshape(B, D)

    # Weights in the compute dtype with zero-padded lanes; biases stay f32 and
    # are added after the f32 accumulation.
    w1_p = jnp.zeros((D, H_pad), compute_dtype).at[:, :H].set(
        w1.astype(compute_dtype))
    b1_p = jnp.zeros((1, H_pad), jnp.float32).at[0, :H].set(
        b1.astype(jnp.float32))
    w2_p = jnp.zeros((H_pad, C_pad), compute_dtype).at[:H, :C].set(
        w2.astype(compute_dtype))
    b2_p = jnp.zeros((1, C_pad), jnp.float32).at[0, :C].set(
        b2.astype(jnp.float32))

    # Padded logits are stored in the matmul dtype (bf16 by default) to halve
    # writeback; real logits are sliced + cast to out_dtype below.
    store_dtype = compute_dtype

    x_bytes = jnp.dtype(x_flat.dtype).itemsize
    w_bytes = jnp.dtype(compute_dtype).itemsize
    o_bytes = jnp.dtype(store_dtype).itemsize

    cost = pl.CostEstimate(
        flops=2 * B * (D * H_pad + H_pad * C_pad),
        transcendentals=0,
        bytes_accessed=(B * D * x_bytes                       # x (f32, read once)
                        + (D * H_pad + H_pad * C_pad) * w_bytes  # weights
                        + (H_pad + C_pad) * 4                 # biases (f32)
                        + B * C_pad * o_bytes),               # out (bf16)
    )

    # VMEM budget: double-buffered x/out tiles + resident weights (2 buffers)
    # + kernel-body temporaries, ~25% headroom, clamped to 48 MiB so it also
    # fits v7x's 64 MiB per-TC VMEM (v5e/v6e have 128 MiB physical).
    x_tile = TB * D * x_bytes
    out_tile = TB * C_pad * o_bytes
    weights = (D * H_pad + H_pad * C_pad) * w_bytes + (H_pad + C_pad) * 4
    temps = TB * D * (4 + w_bytes) + TB * H_pad * (4 + w_bytes) + TB * C_pad * 4
    vmem_limit = min(int(1.25 * (2 * (x_tile + out_tile) + 2 * weights + temps))
                     + (4 << 20), 48 << 20)

    out_padded = pl.pallas_call(
        toynet_kernel,
        out_shape=jax.ShapeDtypeStruct((B, C_pad), store_dtype),
        grid_spec=pltpu.PrefetchScalarGridSpec(
            num_scalar_prefetch=0,
            grid=(n_tiles,),
            in_specs=[
                pl.BlockSpec((TB, D), lambda i: (i, 0)),          # x batch tile (f32)
                pl.BlockSpec((D, H_pad), lambda i: (0, 0)),       # w1 (VMEM-resident)
                pl.BlockSpec((1, H_pad), lambda i: (0, 0)),       # b1 (resident)
                pl.BlockSpec((H_pad, C_pad), lambda i: (0, 0)),   # w2 (resident)
                pl.BlockSpec((1, C_pad), lambda i: (0, 0)),       # b2 (resident)
            ],
            out_specs=pl.BlockSpec((TB, C_pad), lambda i: (i, 0)),
        ),
        compiler_params=pltpu.CompilerParams(
            # Independent batch tiles: megacore-shardable on v7x.
            dimension_semantics=("parallel",),
            vmem_limit_bytes=vmem_limit,
        ),
        cost_estimate=cost,
    )(x_flat, w1_p, b1_p, w2_p, b2_p)

    # Drop the zero-padded class lanes; return logits in out_dtype (f32 default,
    # matching the PyTorch module's interface).
    return out_padded[:, :C].astype(out_dtype)


if __name__ == "__main__":
    num_classes = 10
    B = 2

    key = jax.random.PRNGKey(0)
    kx, k1, k2, k3, k4 = jax.random.split(key, 5)

    # Deterministic synthetic inputs/parameters matching ToyNet(num_classes=10).
    x = jax.random.normal(kx, (B, 1, 28, 28), dtype=jnp.float32)
    w1 = jax.random.normal(k1, (784, 120), dtype=jnp.float32) * 0.05
    b1 = jax.random.normal(k2, (120,), dtype=jnp.float32) * 0.05
    w2 = jax.random.normal(k3, (120, num_classes), dtype=jnp.float32) * 0.05
    b2 = jax.random.normal(k4, (num_classes,), dtype=jnp.float32) * 0.05

    out = jax.block_until_ready(toynet_forward(x, w1, b1, w2, b2))
    assert out.shape == (B, num_classes)
    assert out.dtype == jnp.float32

    # Reference 1: exact mimic of the kernel's mixed precision (f32 ReLU, bf16
    # matmul operands, f32 accumulation + bias, bf16 logit store).
    to_bf = lambda a: a.astype(jnp.bfloat16).astype(jnp.float32)
    xr = to_bf(jnp.maximum(x.reshape(B, -1), 0.0))
    h_ref = jnp.maximum(xr @ to_bf(w1) + b1, 0.0)
    ref_mixed = to_bf(to_bf(h_ref) @ to_bf(w2) + b2)
    assert jnp.allclose(out, ref_mixed, atol=2e-2, rtol=2e-2), \
        "mismatch vs mixed-precision reference"

    # Reference 2: pure-f32 PyTorch semantics; looser tolerance due to bf16
    # matmul operands and bf16 logit storage.
    xf = jnp.maximum(x.reshape(B, -1), 0.0)
    ref_f32 = jnp.maximum(xf @ w1 + b1, 0.0) @ w2 + b2
    assert jnp.allclose(out, ref_f32, atol=6e-2, rtol=6e-2), \
        "mismatch vs f32 reference"

    print("KERNEL_OK")
</pallas_src>

<mosaic_0001>
module attributes {stable_mosaic.version = 11 : i64} {
  func.func @toynet_kernel(%arg0: i32, %arg1: memref<8x784xf32, #tpu.memory_space<vmem>>, %arg2: memref<784x128xbf16, #tpu.memory_space<vmem>>, %arg3: memref<1x128xf32, #tpu.memory_space<vmem>>, %arg4: memref<128x128xbf16, #tpu.memory_space<vmem>>, %arg5: memref<1x128xf32, #tpu.memory_space<vmem>>, %arg6: memref<8x128xbf16, #tpu.memory_space<vmem>>) attributes {dimension_semantics = [#tpu.dimension_semantics<parallel>], iteration_bounds = array<i64: 1>, scalar_prefetch = 0 : i64, scratch_operands = 0 : i64, tpu.core_type = #tpu.core_type<tc>, window_params = [{transform_indices = @transform_0, window_bounds = array<i64: 8, 784>}, {pipeline_mode = #tpu.pipeline_mode<synchronous>, transform_indices = @transform_1, window_bounds = array<i64: 784, 128>}, {pipeline_mode = #tpu.pipeline_mode<synchronous>, transform_indices = @transform_2, window_bounds = array<i64: 1, 128>}, {pipeline_mode = #tpu.pipeline_mode<synchronous>, transform_indices = @transform_3, window_bounds = array<i64: 128, 128>}, {pipeline_mode = #tpu.pipeline_mode<synchronous>, transform_indices = @transform_4, window_bounds = array<i64: 1, 128>}, {transform_indices = @transform_5, window_bounds = array<i64: 8, 128>}]} {
    %c0 = arith.constant 0 : index
    %c0_0 = arith.constant 0 : index
    %0 = vector.load %arg1[%c0, %c0_0] : memref<8x784xf32, #tpu.memory_space<vmem>>, vector<8x784xf32>
    %cst = arith.constant 0.000000e+00 : f32
    %1 = vector.broadcast %cst : f32 to vector<8x784xf32>
    %2 = arith.maximumf %0, %1 : vector<8x784xf32>
    %3 = arith.truncf %2 : vector<8x784xf32> to vector<8x784xbf16>
    %c0_1 = arith.constant 0 : index
    %c0_2 = arith.constant 0 : index
    %4 = vector.load %arg2[%c0_1, %c0_2] : memref<784x128xbf16, #tpu.memory_space<vmem>>, vector<784x128xbf16>
    %cst_3 = arith.constant dense<0.000000e+00> : vector<8x128xf32>
    %5 = tpu.matmul %3, %4, %cst_3 {dimension_numbers = #tpu.dot_dimension_numbers<[1], [0], [0], [1], [0, 0, 1, 1], [], []>} : vector<8x784xbf16>, vector<784x128xbf16>, vector<8x128xf32> -> vector<8x128xf32>
    %c0_4 = arith.constant 0 : index
    %c0_5 = arith.constant 0 : index
    %6 = vector.load %arg3[%c0_4, %c0_5] : memref<1x128xf32, #tpu.memory_space<vmem>>, vector<1x128xf32>
    %7 = vector.broadcast %6 : vector<1x128xf32> to vector<8x128xf32>
    %8 = arith.addf %5, %7 : vector<8x128xf32>
    %cst_6 = arith.constant 0.000000e+00 : f32
    %9 = vector.broadcast %cst_6 : f32 to vector<8x128xf32>
    %10 = arith.maximumf %8, %9 : vector<8x128xf32>
    %11 = arith.truncf %10 : vector<8x128xf32> to vector<8x128xbf16>
    %c0_7 = arith.constant 0 : index
    %c0_8 = arith.constant 0 : index
    %12 = vector.load %arg4[%c0_7, %c0_8] : memref<128x128xbf16, #tpu.memory_space<vmem>>, vector<128x128xbf16>
    %cst_9 = arith.constant dense<0.000000e+00> : vector<8x128xf32>
    %13 = tpu.matmul %11, %12, %cst_9 {dimension_numbers = #tpu.dot_dimension_numbers<[1], [0], [0], [1], [0, 0, 1, 1], [], []>} : vector<8x128xbf16>, vector<128x128xbf16>, vector<8x128xf32> -> vector<8x128xf32>
    %c0_10 = arith.constant 0 : index
    %c0_11 = arith.constant 0 : index
    %14 = vector.load %arg5[%c0_10, %c0_11] : memref<1x128xf32, #tpu.memory_space<vmem>>, vector<1x128xf32>
    %15 = vector.broadcast %14 : vector<1x128xf32> to vector<8x128xf32>
    %16 = arith.addf %13, %15 : vector<8x128xf32>
    %17 = arith.truncf %16 : vector<8x128xf32> to vector<8x128xbf16>
    %c0_12 = arith.constant 0 : index
    %c0_13 = arith.constant 0 : index
    %18 = vector.load %arg6[%c0_12, %c0_13] : memref<8x128xbf16, #tpu.memory_space<vmem>>, vector<8x128xbf16>
    tpu.vector_store %arg6[%c0_12, %c0_13], %17 {strides = array<i32>} : memref<8x128xbf16, #tpu.memory_space<vmem>>, vector<8x128xbf16>,
    return
  }
  func.func @transform_0(%arg0: i32) -> (i32, i32) {
    %c0_i32 = arith.constant 0 : i32
    %c0_i32_0 = arith.constant 0 : i32
    return %arg0, %c0_i32 : i32, i32
  }
  func.func @transform_1(%arg0: i32) -> (i32, i32) {
    %c0_i32 = arith.constant 0 : i32
    %c0_i32_0 = arith.constant 0 : i32
    %c0_i32_1 = arith.constant 0 : i32
    return %c0_i32, %c0_i32_0 : i32, i32
  }
  func.func @transform_2(%arg0: i32) -> (i32, i32) {
    %c0_i32 = arith.constant 0 : i32
    %c0_i32_0 = arith.constant 0 : i32
    %c0_i32_1 = arith.constant 0 : i32
    return %c0_i32, %c0_i32_0 : i32, i32
  }
  func.func @transform_3(%arg0: i32) -> (i32, i32) {
    %c0_i32 = arith.constant 0 : i32
    %c0_i32_0 = arith.constant 0 : i32
    %c0_i32_1 = arith.constant 0 : i32
    return %c0_i32, %c0_i32_0 : i32, i32
  }
  func.func @transform_4(%arg0: i32) -> (i32, i32) {
    %c0_i32 = arith.constant 0 : i32
    %c0_i32_0 = arith.constant 0 : i32
    %c0_i32_1 = arith.constant 0 : i32
    return %c0_i32, %c0_i32_0 : i32, i32
  }
  func.func @transform_5(%arg0: i32) -> (i32, i32) {
    %c0_i32 = arith.constant 0 : i32
    %c0_i32_0 = arith.constant 0 : i32
    return %arg0, %c0_i32 : i32, i32
  }
}

</mosaic_0001>

<llo_original>
// kernel: tpu_custom_call.1
$region0: #{tpu_custom_call.1}
  #allocation0 [shape = 'u32[]', space=smem, size = 0x4, offset = 0x4, fixed_abs, tag = 'smem constant byte address 0x4 - core index']
  #allocation1 [shape = 'u32[144,128]{1,0:T(1,128)}', space=vmem, size = 0x12000, scoped, tag = 'internal scratch']
  %s0 = inlined_call_operand.hbm [shape: f32[2,784], index: 0, kind: input, shape index: {}]
  %s1 = inlined_call_operand.hbm [shape: bf16[784,128], index: 1, kind: input, shape index: {}]
  %s2 = inlined_call_operand.vmem [shape: f32[1,128], index: 2, kind: input, shape index: {}]
  %s3 = inlined_call_operand.hbm [shape: bf16[128,128], index: 3, kind: input, shape index: {}]
  %s4 = inlined_call_operand.vmem [shape: f32[1,128], index: 4, kind: input, shape index: {}]
  %s5 = inlined_call_operand.hbm [shape: bf16[2,128], index: 5, kind: output, shape index: {}]
  %s6 = sld [smem:[#allocation0]]
  $region42: #{tpu_custom_call.1} parent=0
    _
  %s8 = ssub.s32 1, %s6
  %s9 = scalar_select 0, %s8, %s6
  $region1: #{tpu_custom_call.1} parent=0
    #allocation2 [shape = 'u8[28672]{0}', space=vmem, size = 0x7000, scoped, tag = 'input window, operand 0, single buffered']
    #allocation3 [shape = 's32[1]{0}', space=sflag, size = 0x4, scoped, tag = 'scoped memory for tpu_custom_call.1']
    #allocation4 [shape = 's32[1]{0}', space=sflag, size = 0x4, scoped, tag = 'scoped memory for tpu_custom_call.1']
    #allocation5 [shape = 'u8[200704]{0}', space=vmem, size = 0x31000, scoped, tag = 'input window, operand 1, single buffered']
    #allocation6 [shape = 's32[1]{0}', space=sflag, size = 0x4, scoped, tag = 'scoped memory for tpu_custom_call.1']
    #allocation7 [shape = 'u8[32768]{0}', space=vmem, size = 0x8000, scoped, tag = 'input window, operand 3, single buffered']
    #allocation8 [shape = 'u8[2048]{0}', space=vmem, size = 0x800, scoped, tag = 'output window, operand 0, single buffered']
    %10 = vsyncpa [#allocation3], 0
    %11 = vsyncpa [#allocation6], 0
    %12 = vsyncpa [#allocation4], 0
    // Predicated region
    $region2: #{tpu_custom_call.1} parent=1 // pred_check
      _
    $region3: #{tpu_custom_call.1} parent=1 // pred_check_branch
      %14 = sbr.rel (0) target = $region5
    $region4: #{tpu_custom_call.1} parent=1 // pred_region
      %s16 = ssub.s32 896, 224
      %17 = vsyncadd [#allocation3], %s16
      %s18 = sshll.u32 [#allocation2], 4
      %s19 = int_to_ptr.vmem [resolvable:$true] %s18
      %24 = dma.hbm_to_vmem [thread:$0]  %s0, 224, %s19, [#allocation3], 224, 224, 14
    $region5: #{tpu_custom_call.1} parent=1 // pred_fallthru
      _
    // Predicated region
    $region6: #{tpu_custom_call.1} parent=1 // pred_check
      _
    $region7: #{tpu_custom_call.1} parent=1 // pred_check_branch
      %26 = sbr.rel (0) target = $region9
    $region8: #{tpu_custom_call.1} parent=1 // pred_region
      %s28 = ssub.s32 6272, 6272
      %29 = vsyncadd [#allocation6], %s28
      %s30 = sshll.u32 [#allocation5], 4
      %s31 = int_to_ptr.vmem [resolvable:$true] %s30
      %36 = dma.hbm_to_vmem [thread:$0]  %s1, 6272, %s31, [#allocation6], 64, 64, 4
    $region9: #{tpu_custom_call.1} parent=1 // pred_fallthru
      _
    // Predicated region
    $region10: #{tpu_custom_call.1} parent=1 // pred_check
      _
    $region11: #{tpu_custom_call.1} parent=1 // pred_check_branch
      %38 = sbr.rel (0) target = $region13
    $region12: #{tpu_custom_call.1} parent=1 // pred_region
      _
    $region13: #{tpu_custom_call.1} parent=1 // pred_fallthru
      _
    // Predicated region
    $region14: #{tpu_custom_call.1} parent=1 // pred_check
      _
    $region15: #{tpu_custom_call.1} parent=1 // pred_check_branch
      %40 = sbr.rel (0) target = $region17
    $region16: #{tpu_custom_call.1} parent=1 // pred_region
      %s42 = ssub.s32 1024, 1024
      %43 = vsyncadd [#allocation6], %s42
      %s44 = sshll.u32 [#allocation7], 4
      %s45 = int_to_ptr.vmem [resolvable:$true] %s44
      %50 = dma.hbm_to_vmem [thread:$0]  %s3, 1024, %s45, [#allocation6], 64, 64, 4
    $region17: #{tpu_custom_call.1} parent=1 // pred_fallthru
      _
    // Predicated region
    $region18: #{tpu_custom_call.1} parent=1 // pred_check
      _
    $region19: #{tpu_custom_call.1} parent=1 // pred_check_branch
      %52 = sbr.rel (0) target = $region21
    $region20: #{tpu_custom_call.1} parent=1 // pred_region
      _
    $region21: #{tpu_custom_call.1} parent=1 // pred_fallthru
      _
    // Predicated region
    $region22: #{tpu_custom_call.1} parent=1 // pred_check
      _
    $region23: #{tpu_custom_call.1} parent=1 // pred_check_branch
      %54 = sbr.rel (0) target = $region25
    $region24: #{tpu_custom_call.1} parent=1 // pred_region
      %55 = dma.done [#allocation3], 896
    $region25: #{tpu_custom_call.1} parent=1 // pred_fallthru
      _
    // Predicated region
    $region26: #{tpu_custom_call.1} parent=1 // pred_check
      _
    $region27: #{tpu_custom_call.1} parent=1 // pred_check_branch
      %57 = sbr.rel (0) target = $region29
    $region28: #{tpu_custom_call.1} parent=1 // pred_region
      %58 = dma.done [#allocation6], 6272
    $region29: #{tpu_custom_call.1} parent=1 // pred_fallthru
      _
    // Predicated region
    $region30: #{tpu_custom_call.1} parent=1 // pred_check
      _
    $region31: #{tpu_custom_call.1} parent=1 // pred_check_branch
      %60 = sbr.rel (0) target = $region33
    $region32: #{tpu_custom_call.1} parent=1 // pred_region
      %61 = dma.done [#allocation6], 1024
    $region33: #{tpu_custom_call.1} parent=1 // pred_fallthru
      _
    %v63 = vld [vmem:[#allocation2] sm:$0xff]
    %v64 = vld [vmem:[#allocation2 + $0x8] sm:$0x3f]
    %v65 = vld [vmem:[#allocation2 + $0xe] sm:$0xff]
    %v66 = vld [vmem:[#allocation2 + $0x16] sm:$0x3f]
    %v67 = vld [vmem:[#allocation2 + $0x1c] sm:$0xff]
    %v68 = vld [vmem:[#allocation2 + $0x24] sm:$0x3f]
    %v69 = vld [vmem:[#allocation2 + $0x2a] sm:$0xff]
    %v70 = vld [vmem:[#allocation2 + $0x32] sm:$0x3f]
    %v71 = vmax.f32 %v63, 0.0
    %v72 = vmax.f32 %v64, 0.0
    %v73 = vmax.f32 %v65, 0.0
    %v74 = vmax.f32 %v66, 0.0
    %v75 = vmax.f32 %v67, 0.0
    %v76 = vmax.f32 %v68, 0.0
    %v77 = vmax.f32 %v69, 0.0
    %v78 = vmax.f32 %v70, 0.0
    %v87 = vcombine.low %v71, %v73
    %v88 = vcombine.high %v71, %v73
    %v89 = vcombine.low %v75, %v77
    %v90 = vcombine.high %v75, %v77
    %v92 = vunpack.c.l.s4 1983009808
    %v93 = vunpack.c.0.s8 %v92
    %v94 = vlaneseq
    %v95 = vshrl.u32 %v94, 7
    %v96 = vsub.s32 %v93, %v95
    %v97 = vrot.slane %v87, %v96
    %v99 = vunpack.c.l.s4 1983009808
    %v100 = vunpack.c.0.s8 %v99
    %v101 = vlaneseq
    %v102 = vshrl.u32 %v101, 7
    %v103 = vsub.s32 %v100, %v102
    %v104 = vrot.slane %v88, %v103
    %v106 = vunpack.c.l.s4 1983009808
    %v107 = vunpack.c.0.s8 %v106
    %v108 = vlaneseq
    %v109 = vshrl.u32 %v108, 7
    %v110 = vsub.s32 %v107, %v109
    %v111 = vrot.slane %v89, %v110
    %v113 = vunpack.c.l.s4 1983009808
    %v114 = vunpack.c.0.s8 %v113
    %v115 = vlaneseq
    %v116 = vshrl.u32 %v115, 7
    %v117 = vsub.s32 %v114, %v116
    %v118 = vrot.slane %v90, %v117
    %v119 = vcombine.low %v97, %v111
    %v120 = vcombine.high %v97, %v111
    %v121 = vcombine.low %v104, %v118
    %v122 = vcombine.high %v104, %v118
    %v123 = vcombine.low %v72, %v74
    %v124 = vcombine.high %v72, %v74
    %v125 = vcombine.low %v76, %v78
    %v126 = vcombine.high %v76, %v78
    %v128 = vunpack.c.l.s4 1983009808
    %v129 = vunpack.c.0.s8 %v128
    %v130 = vlaneseq
    %v131 = vshrl.u32 %v130, 7
    %v132 = vsub.s32 %v129, %v131
    %v133 = vrot.slane %v123, %v132
    %v135 = vunpack.c.l.s4 1983009808
    %v136 = vunpack.c.0.s8 %v135
    %v137 = vlaneseq
    %v138 = vshrl.u32 %v137, 7
    %v139 = vsub.s32 %v136, %v138
    %v140 = vrot.slane %v124, %v139
    %v142 = vunpack.c.l.s4 1983009808
    %v143 = vunpack.c.0.s8 %v142
    %v144 = vlaneseq
    %v145 = vshrl.u32 %v144, 7
    %v146 = vsub.s32 %v143, %v145
    %v147 = vrot.slane %v125, %v146
    %v149 = vunpack.c.l.s4 1983009808
    %v150 = vunpack.c.0.s8 %v149
    %v151 = vlaneseq
    %v152 = vshrl.u32 %v151, 7
    %v153 = vsub.s32 %v150, %v152
    %v154 = vrot.slane %v126, %v153
    %v155 = vcombine.low %v133, %v147
    %v156 = vcombine.high %v133, %v147
    %v157 = vcombine.low %v140, %v154
    %v165 = vpack.c.bf16 %v119, %v119
    %v166 = vpack.c.bf16 %v120, %v120
    %v167 = vpack.c.bf16 %v121, %v121
    %v168 = vpack.c.bf16 %v122, %v122
    %v169 = vpack.c.bf16 %v155, %v155
    %v170 = vpack.c.bf16 %v156, %v156
    %v171 = vpack.c.bf16 %v157, %v157
    %v172 = vld [vmem:[#allocation5] sm:$0xf]
    %v173 = vld [vmem:[#allocation5 + $0x4] sm:$0xf]
    %v174 = vld [vmem:[#allocation5 + $0x8] sm:$0xf]
    %v175 = vld [vmem:[#allocation5 + $0xc] sm:$0xf]
    %v176 = vld [vmem:[#allocation5 + $0x10] sm:$0xf]
    %v177 = vld [vmem:[#allocation5 + $0x14] sm:$0xf]
    %v178 = vld [vmem:[#allocation5 + $0x18] sm:$0xf]
    %v179 = vld [vmem:[#allocation5 + $0x1c] sm:$0xf]
    %v180 = vld [vmem:[#allocation5 + $0x20] sm:$0xf]
    %v181 = vld [vmem:[#allocation5 + $0x24] sm:$0xf]
    %v182 = vld [vmem:[#allocation5 + $0x28] sm:$0xf]
    %v183 = vld [vmem:[#allocation5 + $0x2c] sm:$0xf]
    %v184 = vld [vmem:[#allocation5 + $0x30] sm:$0xf]
    %v185 = vld [vmem:[#allocation5 + $0x34] sm:$0xf]
    %v186 = vld [vmem:[#allocation5 + $0x38] sm:$0xf]
    %v187 = vld [vmem:[#allocation5 + $0x3c] sm:$0xf]
    %v188 = vld [vmem:[#allocation5 + $0x40] sm:$0xf]
    %v189 = vld [vmem:[#allocation5 + $0x44] sm:$0xf]
    %v190 = vld [vmem:[#allocation5 + $0x48] sm:$0xf]
    %v191 = vld [vmem:[#allocation5 + $0x4c] sm:$0xf]
    %v192 = vld [vmem:[#allocation5 + $0x50] sm:$0xf]
    %v193 = vld [vmem:[#allocation5 + $0x54] sm:$0xf]
    %v194 = vld [vmem:[#allocation5 + $0x58] sm:$0xf]
    %v195 = vld [vmem:[#allocation5 + $0x5c] sm:$0xf]
    %v196 = vld [vmem:[#allocation5 + $0x60] sm:$0xf]
    %v197 = vld [vmem:[#allocation5 + $0x64] sm:$0xf]
    %v198 = vld [vmem:[#allocation5 + $0x68] sm:$0xf]
    %v199 = vld [vmem:[#allocation5 + $0x6c] sm:$0xf]
    %v200 = vld [vmem:[#allocation5 + $0x70] sm:$0xf]
    %v201 = vld [vmem:[#allocation5 + $0x74] sm:$0xf]
    %v202 = vld [vmem:[#allocation5 + $0x78] sm:$0xf]
    %v203 = vld [vmem:[#allocation5 + $0x7c] sm:$0xf]
    %v204 = vld [vmem:[#allocation5 + $0x80] sm:$0xf]
    %v205 = vld [vmem:[#allocation5 + $0x84] sm:$0xf]
    %v206 = vld [vmem:[#allocation5 + $0x88] sm:$0xf]
    %v207 = vld [vmem:[#allocation5 + $0x8c] sm:$0xf]
    %v208 = vld [vmem:[#allocation5 + $0x90] sm:$0xf]
    %v209 = vld [vmem:[#allocation5 + $0x94] sm:$0xf]
    %v210 = vld [vmem:[#allocation5 + $0x98] sm:$0xf]
    %v211 = vld [vmem:[#allocation5 + $0x9c] sm:$0xf]
    %v212 = vld [vmem:[#allocation5 + $0xa0] sm:$0xf]
    %v213 = vld [vmem:[#allocation5 + $0xa4] sm:$0xf]
    %v214 = vld [vmem:[#allocation5 + $0xa8] sm:$0xf]
    %v215 = vld [vmem:[#allocation5 + $0xac] sm:$0xf]
    %v216 = vld [vmem:[#allocation5 + $0xb0] sm:$0xf]
    %v217 = vld [vmem:[#allocation5 + $0xb4] sm:$0xf]
    %v218 = vld [vmem:[#allocation5 + $0xb8] sm:$0xf]
    %v219 = vld [vmem:[#allocation5 + $0xbc] sm:$0xf]
    %v220 = vld [vmem:[#allocation5 + $0xc0] sm:$0xf]
    %v221 = vld [vmem:[#allocation5 + $0xc4] sm:$0xf]
    %v222 = vld [vmem:[#allocation5 + $0xc8] sm:$0xf]
    %v223 = vld [vmem:[#allocation5 + $0xcc] sm:$0xf]
    %v224 = vld [vmem:[#allocation5 + $0xd0] sm:$0xf]
    %v225 = vld [vmem:[#allocation5 + $0xd4] sm:$0xf]
    %v226 = vld [vmem:[#allocation5 + $0xd8] sm:$0xf]
    %v227 = vld [vmem:[#allocation5 + $0xdc] sm:$0xf]
    %v228 = vld [vmem:[#allocation5 + $0xe0] sm:$0xf]
    %v229 = vld [vmem:[#allocation5 + $0xe4] sm:$0xf]
    %v230 = vld [vmem:[#allocation5 + $0xe8] sm:$0xf]
    %v231 = vld [vmem:[#allocation5 + $0xec] sm:$0xf]
    %v232 = vld [vmem:[#allocation5 + $0xf0] sm:$0xf]
    %v233 = vld [vmem:[#allocation5 + $0xf4] sm:$0xf]
    %v234 = vld [vmem:[#allocation5 + $0xf8] sm:$0xf]
    %v235 = vld [vmem:[#allocation5 + $0xfc] sm:$0xf]
    %v236 = vld [vmem:[#allocation5 + $0x100] sm:$0xf]
    %v237 = vld [vmem:[#allocation5 + $0x104] sm:$0xf]
    %v238 = vld [vmem:[#allocation5 + $0x108] sm:$0xf]
    %v239 = vld [vmem:[#allocation5 + $0x10c] sm:$0xf]
    %v240 = vld [vmem:[#allocation5 + $0x110] sm:$0xf]
    %v241 = vld [vmem:[#allocation5 + $0x114] sm:$0xf]
    %v242 = vld [vmem:[#allocation5 + $0x118] sm:$0xf]
    %v243 = vld [vmem:[#allocation5 + $0x11c] sm:$0xf]
    %v244 = vld [vmem:[#allocation5 + $0x120] sm:$0xf]
    %v245 = vld [vmem:[#allocation5 + $0x124] sm:$0xf]
    %v246 = vld [vmem:[#allocation5 + $0x128] sm:$0xf]
    %v247 = vld [vmem:[#allocation5 + $0x12c] sm:$0xf]
    %v248 = vld [vmem:[#allocation5 + $0x130] sm:$0xf]
    %v249 = vld [vmem:[#allocation5 + $0x134] sm:$0xf]
    %v250 = vld [vmem:[#allocation5 + $0x138] sm:$0xf]
    %v251 = vld [vmem:[#allocation5 + $0x13c] sm:$0xf]
    %v252 = vld [vmem:[#allocation5 + $0x140] sm:$0xf]
    %v253 = vld [vmem:[#allocation5 + $0x144] sm:$0xf]
    %v254 = vld [vmem:[#allocation5 + $0x148] sm:$0xf]
    %v255 = vld [vmem:[#allocation5 + $0x14c] sm:$0xf]
    %v256 = vld [vmem:[#allocation5 + $0x150] sm:$0xf]
    %v257 = vld [vmem:[#allocation5 + $0x154] sm:$0xf]
    %v258 = vld [vmem:[#allocation5 + $0x158] sm:$0xf]
    %v259 = vld [vmem:[#allocation5 + $0x15c] sm:$0xf]
    %v260 = vld [vmem:[#allocation5 + $0x160] sm:$0xf]
    %v261 = vld [vmem:[#allocation5 + $0x164] sm:$0xf]
    %v262 = vld [vmem:[#allocation5 + $0x168] sm:$0xf]
    %v263 = vld [vmem:[#allocation5 + $0x16c] sm:$0xf]
    %v264 = vld [vmem:[#allocation5 + $0x170] sm:$0xf]
    %v265 = vld [vmem:[#allocation5 + $0x174] sm:$0xf]
    %v266 = vld [vmem:[#allocation5 + $0x178] sm:$0xf]
    %v267 = vld [vmem:[#allocation5 + $0x17c] sm:$0xf]
    %v268 = vld [vmem:[#allocation5 + $0x180] sm:$0xf]
    %v269 = vld [vmem:[#allocation5 + $0x184] sm:$0xf]
    %v270 = vld [vmem:[%s2] sm:$0x1]
    %v272 = vlaneseq
    %v273 = vshrl.u32 %v272, 7
    %v274 = vsub.s32 0, %v273
    %v275 = vrot.slane %v270, %v274
    %v375 = vunpack.c.l.b16 %v172
    %v376 = vunpack.c.l.b16 %v173
    %v377 = vunpack.c.l.b16 %v174
    %v378 = vunpack.c.l.b16 %v175
    %v379 = vunpack.c.l.b16 %v176
    %v380 = vunpack.c.l.b16 %v177
    %v381 = vunpack.c.l.b16 %v178
    %v382 = vunpack.c.l.b16 %v179
    %v383 = vunpack.c.l.b16 %v180
    %v384 = vunpack.c.l.b16 %v181
    %v385 = vunpack.c.l.b16 %v182
    %v386 = vunpack.c.l.b16 %v183
    %v387 = vunpack.c.l.b16 %v184
    %v388 = vunpack.c.l.b16 %v185
    %v389 = vunpack.c.l.b16 %v186
    %v390 = vunpack.c.l.b16 %v187
    %v391 = vunpack.c.l.b16 %v188
    %v392 = vunpack.c.l.b16 %v189
    %v393 = vunpack.c.l.b16 %v190
    %v394 = vunpack.c.l.b16 %v191
    %v395 = vunpack.c.l.b16 %v192
    %v396 = vunpack.c.l.b16 %v193
    %v397 = vunpack.c.l.b16 %v194
    %v398 = vunpack.c.l.b16 %v195
    %v399 = vunpack.c.l.b16 %v196
    %v400 = vunpack.c.l.b16 %v197
    %v401 = vunpack.c.l.b16 %v198
    %v402 = vunpack.c.l.b16 %v199
    %v403 = vunpack.c.l.b16 %v200
    %v404 = vunpack.c.l.b16 %v201
    %v405 = vunpack.c.l.b16 %v202
    %v406 = vunpack.c.l.b16 %v203
    %v407 = vunpack.c.l.b16 %v204
    %v408 = vunpack.c.l.b16 %v205
    %v409 = vunpack.c.l.b16 %v206
    %v410 = vunpack.c.l.b16 %v207
    %v411 = vunpack.c.l.b16 %v208
    %v412 = vunpack.c.l.b16 %v209
    %v413 = vunpack.c.l.b16 %v210
    %v414 = vunpack.c.l.b16 %v211
    %v415 = vunpack.c.l.b16 %v212
    %v416 = vunpack.c.l.b16 %v213
    %v417 = vunpack.c.l.b16 %v214
    %v418 = vunpack.c.l.b16 %v215
    %v419 = vunpack.c.l.b16 %v216
    %v420 = vunpack.c.l.b16 %v217
    %v421 = vunpack.c.l.b16 %v218
    %v422 = vunpack.c.l.b16 %v219
    %v423 = vunpack.c.l.b16 %v220
    %v424 = vunpack.c.l.b16 %v221
    %v425 = vunpack.c.l.b16 %v222
    %v426 = vunpack.c.l.b16 %v223
    %v427 = vunpack.c.l.b16 %v224
    %v428 = vunpack.c.l.b16 %v225
    %v429 = vunpack.c.l.b16 %v226
    %v430 = vunpack.c.l.b16 %v227
    %v431 = vunpack.c.l.b16 %v228
    %v432 = vunpack.c.l.b16 %v229
    %v433 = vunpack.c.l.b16 %v230
    %v434 = vunpack.c.l.b16 %v231
    %v435 = vunpack.c.l.b16 %v232
    %v436 = vunpack.c.l.b16 %v233
    %v437 = vunpack.c.l.b16 %v234
    %v438 = vunpack.c.l.b16 %v235
    %v439 = vunpack.c.l.b16 %v236
    %v440 = vunpack.c.l.b16 %v237
    %v441 = vunpack.c.l.b16 %v238
    %v442 = vunpack.c.l.b16 %v239
    %v443 = vunpack.c.l.b16 %v240
    %v444 = vunpack.c.l.b16 %v241
    %v445 = vunpack.c.l.b16 %v242
    %v446 = vunpack.c.l.b16 %v243
    %v447 = vunpack.c.l.b16 %v244
    %v448 = vunpack.c.l.b16 %v245
    %v449 = vunpack.c.l.b16 %v246
    %v450 = vunpack.c.l.b16 %v247
    %v451 = vunpack.c.l.b16 %v248
    %v452 = vunpack.c.l.b16 %v249
    %v453 = vunpack.c.l.b16 %v250
    %v454 = vunpack.c.l.b16 %v251
    %v455 = vunpack.c.l.b16 %v252
    %v456 = vunpack.c.l.b16 %v253
    %v457 = vunpack.c.l.b16 %v254
    %v458 = vunpack.c.l.b16 %v255
    %v459 = vunpack.c.l.b16 %v256
    %v460 = vunpack.c.l.b16 %v257
    %v461 = vunpack.c.l.b16 %v258
    %v462 = vunpack.c.l.b16 %v259
    %v463 = vunpack.c.l.b16 %v260
    %v464 = vunpack.c.l.b16 %v261
    %v465 = vunpack.c.l.b16 %v262
    %v466 = vunpack.c.l.b16 %v263
    %v467 = vunpack.c.l.b16 %v264
    %v468 = vunpack.c.l.b16 %v265
    %v469 = vunpack.c.l.b16 %v266
    %v470 = vunpack.c.l.b16 %v267
    %v471 = vunpack.c.l.b16 %v268
    %v472 = vunpack.c.l.b16 %v269
    %v473 = vpack.c.b16 %v376, %v375
    %v474 = vpack.c.b16 %v378, %v377
    %v475 = vpack.c.b16 %v380, %v379
    %v476 = vpack.c.b16 %v382, %v381
    %v477 = vpack.c.b16 %v384, %v383
    %v478 = vpack.c.b16 %v386, %v385
    %v479 = vpack.c.b16 %v388, %v387
    %v480 = vpack.c.b16 %v390, %v389
    %v481 = vpack.c.b16 %v392, %v391
    %v482 = vpack.c.b16 %v394, %v393
    %v483 = vpack.c.b16 %v396, %v395
    %v484 = vpack.c.b16 %v398, %v397
    %v485 = vpack.c.b16 %v400, %v399
    %v486 = vpack.c.b16 %v402, %v401
    %v487 = vpack.c.b16 %v404, %v403
    %v488 = vpack.c.b16 %v406, %v405
    %v489 = vpack.c.b16 %v408, %v407
    %v490 = vpack.c.b16 %v410, %v409
    %v491 = vpack.c.b16 %v412, %v411
    %v492 = vpack.c.b16 %v414, %v413
    %v493 = vpack.c.b16 %v416, %v415
    %v494 = vpack.c.b16 %v418, %v417
    %v495 = vpack.c.b16 %v420, %v419
    %v496 = vpack.c.b16 %v422, %v421
    %v497 = vpack.c.b16 %v424, %v423
    %v498 = vpack.c.b16 %v426, %v425
    %v499 = vpack.c.b16 %v428, %v427
    %v500 = vpack.c.b16 %v430, %v429
    %v501 = vpack.c.b16 %v432, %v431
    %v502 = vpack.c.b16 %v434, %v433
    %v503 = vpack.c.b16 %v436, %v435
    %v504 = vpack.c.b16 %v438, %v437
    %v505 = vpack.c.b16 %v440, %v439
    %v506 = vpack.c.b16 %v442, %v441
    %v507 = vpack.c.b16 %v444, %v443
    %v508 = vpack.c.b16 %v446, %v445
    %v509 = vpack.c.b16 %v448, %v447
    %v510 = vpack.c.b16 %v450, %v449
    %v511 = vpack.c.b16 %v452, %v451
    %v512 = vpack.c.b16 %v454, %v453
    %v513 = vpack.c.b16 %v456, %v455
    %v514 = vpack.c.b16 %v458, %v457
    %v515 = vpack.c.b16 %v460, %v459
    %v516 = vpack.c.b16 %v462, %v461
    %v517 = vpack.c.b16 %v464, %v463
    %v518 = vpack.c.b16 %v466, %v465
    %v519 = vpack.c.b16 %v468, %v467
    %v520 = vpack.c.b16 %v470, %v469
    %v521 = vpack.c.b16 %v472, %v471
    %vm571 = vcmask 130048
    %v573 = vsel %vm571, %v171, 0
    %575 = vmatprep.subr.bf16.mxu0 0
    %576 = vmatpush1.bf16.msra.mxu0 %v473
    %577 = vmatprep.subr.bf16.mxu0 0
    %578 = vmatpush1.bf16.msra.mxu0 %v474
    %579 = vmatprep.subr.bf16.mxu0 0
    %580 = vmatpush1.bf16.msra.mxu0 %v475
    %581 = vmatprep.subr.bf16.mxu0 0
    %582 = vmatpush1.bf16.msra.mxu0 %v476
    %583 = vmatprep.subr.bf16.mxu0 0
    %584 = vmatpush1.bf16.msra.mxu0 %v477
    %585 = vmatprep.subr.bf16.mxu0 0
    %586 = vmatpush1.bf16.msra.mxu0 %v478
    %587 = vmatprep.subr.bf16.mxu0 0
    %588 = vmatpush1.bf16.msra.mxu0 %v479
    %589 = vmatprep.subr.bf16.mxu0 0
    %590 = vmatpush1.bf16.msra.mxu0 %v480
    %591 = vmatprep.subr.bf16.mxu0 0
    %592 = vmatpush1.bf16.msra.mxu0 %v481
    %593 = vmatprep.subr.bf16.mxu0 0
    %594 = vmatpush1.bf16.msra.mxu0 %v482
    %595 = vmatprep.subr.bf16.mxu0 0
    %596 = vmatpush1.bf16.msra.mxu0 %v483
    %597 = vmatprep.subr.bf16.mxu0 0
    %598 = vmatpush1.bf16.msra.mxu0 %v484
    %599 = vmatprep.subr.bf16.mxu0 0
    %600 = vmatpush1.bf16.msra.mxu0 %v485
    %601 = vmatprep.subr.bf16.mxu0 0
    %602 = vmatpush1.bf16.msra.mxu0 %v486
    %603 = vmatprep.subr.bf16.mxu0 0
    %604 = vmatpush1.bf16.msra.mxu0 %v487
    %605 = vmatprep.subr.bf16.mxu0 0
    %606 = vmatpush1.bf16.msra.mxu0 %v488
    %607 = vmatprep.mubr.bf16.mxu0 %v166
    %608 = vmatmul.mubr.bf16.gmra.mrb[0].mxu0 %v165
    %v609 = vpop.f32.mrb[0].mxu0
    %v610 = vadd.f32 %v275, %v609
    %v611 = vpop.f32.mrb[0].mxu0
    %v612 = vpop.f32.mrb[0].mxu0
    %v613 = vpop.f32.mrb[0].mxu0
    %614 = vdwg.mxu0
    %615 = vmatprep.subr.bf16.mxu0 0
    %616 = vmatpush1.bf16.msra.mxu0 %v489
    %617 = vmatprep.subr.bf16.mxu0 0
    %618 = vmatpush1.bf16.msra.mxu0 %v490
    %619 = vmatprep.subr.bf16.mxu0 0
    %620 = vmatpush1.bf16.msra.mxu0 %v491
    %621 = vmatprep.subr.bf16.mxu0 0
    %622 = vmatpush1.bf16.msra.mxu0 %v492
    %623 = vmatprep.subr.bf16.mxu0 0
    %624 = vmatpush1.bf16.msra.mxu0 %v493
    %625 = vmatprep.subr.bf16.mxu0 0
    %626 = vmatpush1.bf16.msra.mxu0 %v494
    %627 = vmatprep.subr.bf16.mxu0 0
    %628 = vmatpush1.bf16.msra.mxu0 %v495
    %629 = vmatprep.subr.bf16.mxu0 0
    %630 = vmatpush1.bf16.msra.mxu0 %v496
    %631 = vmatprep.subr.bf16.mxu0 0
    %632 = vmatpush1.bf16.msra.mxu0 %v497
    %633 = vmatprep.subr.bf16.mxu0 0
    %634 = vmatpush1.bf16.msra.mxu0 %v498
    %635 = vmatprep.subr.bf16.mxu0 0
    %636 = vmatpush1.bf16.msra.mxu0 %v499
    %637 = vmatprep.subr.bf16.mxu0 0
    %638 = vmatpush1.bf16.msra.mxu0 %v500
    %639 = vmatprep.subr.bf16.mxu0 0
    %640 = vmatpush1.bf16.msra.mxu0 %v501
    %641 = vmatprep.subr.bf16.mxu0 0
    %642 = vmatpush1.bf16.msra.mxu0 %v502
    %643 = vmatprep.subr.bf16.mxu0 0
    %644 = vmatpush1.bf16.msra.mxu0 %v503
    %645 = vmatprep.subr.bf16.mxu0 0
    %646 = vmatpush1.bf16.msra.mxu0 %v504
    %647 = vmatprep.mubr.bf16.mxu0 %v168
    %648 = vmatmul.mubr.bf16.gmra.mrb[0].mxu0 %v167
    %v649 = vpop.f32.mrb[0].mxu0
    %v650 = vadd.f32 %v610, %v649
    %v651 = vpop.f32.mrb[0].mxu0
    %v652 = vpop.f32.mrb[0].mxu0
    %v653 = vpop.f32.mrb[0].mxu0
    %654 = vdwg.mxu0
    %655 = vmatprep.subr.bf16.mxu0 0
    %656 = vmatpush1.bf16.msra.mxu0 %v505
    %657 = vmatprep.subr.bf16.mxu0 0
    %658 = vmatpush1.bf16.msra.mxu0 %v506
    %659 = vmatprep.subr.bf16.mxu0 0
    %660 = vmatpush1.bf16.msra.mxu0 %v507
    %661 = vmatprep.subr.bf16.mxu0 0
    %662 = vmatpush1.bf16.msra.mxu0 %v508
    %663 = vmatprep.subr.bf16.mxu0 0
    %664 = vmatpush1.bf16.msra.mxu0 %v509
    %665 = vmatprep.subr.bf16.mxu0 0
    %666 = vmatpush1.bf16.msra.mxu0 %v510
    %667 = vmatprep.subr.bf16.mxu0 0
    %668 = vmatpush1.bf16.msra.mxu0 %v511
    %669 = vmatprep.subr.bf16.mxu0 0
    %670 = vmatpush1.bf16.msra.mxu0 %v512
    %671 = vmatprep.subr.bf16.mxu0 0
    %672 = vmatpush1.bf16.msra.mxu0 %v513
    %673 = vmatprep.subr.bf16.mxu0 0
    %674 = vmatpush1.bf16.msra.mxu0 %v514
    %675 = vmatprep.subr.bf16.mxu0 0
    %676 = vmatpush1.bf16.msra.mxu0 %v515
    %677 = vmatprep.subr.bf16.mxu0 0
    %678 = vmatpush1.bf16.msra.mxu0 %v516
    %679 = vmatprep.subr.bf16.mxu0 0
    %680 = vmatpush1.bf16.msra.mxu0 %v517
    %681 = vmatprep.subr.bf16.mxu0 0
    %682 = vmatpush1.bf16.msra.mxu0 %v518
    %683 = vmatprep.subr.bf16.mxu0 0
    %684 = vmatpush1.bf16.msra.mxu0 %v519
    %685 = vmatprep.subr.bf16.mxu0 0
    %686 = vmatpush1.bf16.msra.mxu0 %v520
    %687 = vmatprep.mubr.bf16.mxu0 %v170
    %688 = vmatmul.mubr.bf16.gmra.mrb[0].mxu0 %v169
    %v689 = vpop.f32.mrb[0].mxu0
    %v690 = vadd.f32 %v650, %v689
    %v691 = vpop.f32.mrb[0].mxu0
    %v692 = vpop.f32.mrb[0].mxu0
    %v693 = vpop.f32.mrb[0].mxu0
    %694 = vdwg.mxu0
    %695 = vmatprep.subr.bf16.mxu0 0
    %696 = vmatpush1.bf16.msra.mxu0 %v521
    %697 = vmatprep.subr.bf16.mxu0 0
    %698 = vmatpush1.bf16.msra.mxu0 0
    %699 = vmatprep.subr.bf16.mxu0 0
    %700 = vmatpush1.bf16.msra.mxu0 0
    %701 = vmatprep.subr.bf16.mxu0 0
    %702 = vmatpush1.bf16.msra.mxu0 0
    %703 = vmatprep.subr.bf16.mxu0 0
    %704 = vmatpush1.bf16.msra.mxu0 0
    %705 = vmatprep.subr.bf16.mxu0 0
    %706 = vmatpush1.bf16.msra.mxu0 0
    %707 = vmatprep.subr.bf16.mxu0 0
    %708 = vmatpush1.bf16.msra.mxu0 0
    %709 = vmatprep.subr.bf16.mxu0 0
    %710 = vmatpush1.bf16.msra.mxu0 0
    %711 = vmatprep.subr.bf16.mxu0 0
    %712 = vmatpush1.bf16.msra.mxu0 0
    %713 = vmatprep.subr.bf16.mxu0 0
    %714 = vmatpush1.bf16.msra.mxu0 0
    %715 = vmatprep.subr.bf16.mxu0 0
    %716 = vmatpush1.bf16.msra.mxu0 0
    %717 = vmatprep.subr.bf16.mxu0 0
    %718 = vmatpush1.bf16.msra.mxu0 0
    %719 = vmatprep.subr.bf16.mxu0 0
    %720 = vmatpush1.bf16.msra.mxu0 0
    %721 = vmatprep.subr.bf16.mxu0 0
    %722 = vmatpush1.bf16.msra.mxu0 0
    %723 = vmatprep.subr.bf16.mxu0 0
    %724 = vmatpush1.bf16.msra.mxu0 0
    %725 = vmatprep.subr.bf16.mxu0 0
    %726 = vmatpush1.bf16.msra.mxu0 0
    %727 = vmatprep.mubr.bf16.mxu0 0
    %728 = vmatmul.mubr.bf16.gmra.mrb[0].mxu0 %v573
    %v729 = vpop.f32.mrb[0].mxu0
    %v730 = vadd.f32 %v690, %v729
    %v731 = vpop.f32.mrb[0].mxu0
    %v732 = vpop.f32.mrb[0].mxu0
    %v733 = vpop.f32.mrb[0].mxu0
    %734 = vdwg.mxu0
    %v735 = vmax.f32 %v730, 0.0
    %v736 = vpack.c.bf16 %v735, %v735
    %v737 = vld [vmem:[#allocation7] sm:$0xf]
    %v738 = vld [vmem:[#allocation7 + $0x4] sm:$0xf]
    %v739 = vld [vmem:[#allocation7 + $0x8] sm:$0xf]
    %v740 = vld [vmem:[#allocation7 + $0xc] sm:$0xf]
    %v741 = vld [vmem:[#allocation7 + $0x10] sm:$0xf]
    %v742 = vld [vmem:[#allocation7 + $0x14] sm:$0xf]
    %v743 = vld [vmem:[#allocation7 + $0x18] sm:$0xf]
    %v744 = vld [vmem:[#allocation7 + $0x1c] sm:$0xf]
    %v745 = vld [vmem:[#allocation7 + $0x20] sm:$0xf]
    %v746 = vld [vmem:[#allocation7 + $0x24] sm:$0xf]
    %v747 = vld [vmem:[#allocation7 + $0x28] sm:$0xf]
    %v748 = vld [vmem:[#allocation7 + $0x2c] sm:$0xf]
    %v749 = vld [vmem:[#allocation7 + $0x30] sm:$0xf]
    %v750 = vld [vmem:[#allocation7 + $0x34] sm:$0xf]
    %v751 = vld [vmem:[#allocation7 + $0x38] sm:$0xf]
    %v752 = vld [vmem:[#allocation7 + $0x3c] sm:$0xf]
    %v753 = vld [vmem:[%s4] sm:$0x1]
    %v755 = vlaneseq
    %v756 = vshrl.u32 %v755, 7
    %v757 = vsub.s32 0, %v756
    %v758 = vrot.slane %v753, %v757
    %v776 = vunpack.c.l.b16 %v737
    %v777 = vunpack.c.l.b16 %v738
    %v778 = vunpack.c.l.b16 %v739
    %v779 = vunpack.c.l.b16 %v740
    %v780 = vunpack.c.l.b16 %v741
    %v781 = vunpack.c.l.b16 %v742
    %v782 = vunpack.c.l.b16 %v743
    %v783 = vunpack.c.l.b16 %v744
    %v784 = vunpack.c.l.b16 %v745
    %v785 = vunpack.c.l.b16 %v746
    %v786 = vunpack.c.l.b16 %v747
    %v787 = vunpack.c.l.b16 %v748
    %v788 = vunpack.c.l.b16 %v749
    %v789 = vunpack.c.l.b16 %v750
    %v790 = vunpack.c.l.b16 %v751
    %v791 = vunpack.c.l.b16 %v752
    %v792 = vpack.c.b16 %v777, %v776
    %v793 = vpack.c.b16 %v779, %v778
    %v794 = vpack.c.b16 %v781, %v780
    %v795 = vpack.c.b16 %v783, %v782
    %v796 = vpack.c.b16 %v785, %v784
    %v797 = vpack.c.b16 %v787, %v786
    %v798 = vpack.c.b16 %v789, %v788
    %v799 = vpack.c.b16 %v791, %v790
    %808 = vmatprep.subr.bf16.mxu0 0
    %809 = vmatpush1.bf16.msra.mxu0 %v792
    %810 = vmatprep.subr.bf16.mxu0 0
    %811 = vmatpush1.bf16.msra.mxu0 %v793
    %812 = vmatprep.subr.bf16.mxu0 0
    %813 = vmatpush1.bf16.msra.mxu0 %v794
    %814 = vmatprep.subr.bf16.mxu0 0
    %815 = vmatpush1.bf16.msra.mxu0 %v795
    %816 = vmatprep.subr.bf16.mxu0 0
    %817 = vmatpush1.bf16.msra.mxu0 %v796
    %818 = vmatprep.subr.bf16.mxu0 0
    %819 = vmatpush1.bf16.msra.mxu0 %v797
    %820 = vmatprep.subr.bf16.mxu0 0
    %821 = vmatpush1.bf16.msra.mxu0 %v798
    %822 = vmatprep.subr.bf16.mxu0 0
    %823 = vmatpush1.bf16.msra.mxu0 %v799
    %824 = vmatprep.subr.bf16.mxu0 0
    %825 = vmatpush1.bf16.msra.mxu0 0
    %826 = vmatprep.subr.bf16.mxu0 0
    %827 = vmatpush1.bf16.msra.mxu0 0
    %828 = vmatprep.subr.bf16.mxu0 0
    %829 = vmatpush1.bf16.msra.mxu0 0
    %830 = vmatprep.subr.bf16.mxu0 0
    %831 = vmatpush1.bf16.msra.mxu0 0
    %832 = vmatprep.subr.bf16.mxu0 0
    %833 = vmatpush1.bf16.msra.mxu0 0
    %834 = vmatprep.subr.bf16.mxu0 0
    %835 = vmatpush1.bf16.msra.mxu0 0
    %836 = vmatprep.subr.bf16.mxu0 0
    %837 = vmatpush1.bf16.msra.mxu0 0
    %838 = vmatprep.subr.bf16.mxu0 0
    %839 = vmatpush1.bf16.msra.mxu0 0
    %840 = vmatprep.mubr.bf16.mxu0 0
    %841 = vmatmul.mubr.bf16.gmra.mrb[0].mxu0 %v736
    %v842 = vpop.f32.mrb[0].mxu0
    %v843 = vadd.f32 %v758, %v842
    %v844 = vpop.f32.mrb[0].mxu0
    %v845 = vpop.f32.mrb[0].mxu0
    %v846 = vpop.f32.mrb[0].mxu0
    %847 = vdwg.mxu0
    %v848 = vpack.c.bf16 %v843, %v843
    %v851 = vunpack.c.l.s4 1966171168
    %v852 = vunpack.c.0.s8 %v851
    %v853 = vlaneseq
    %v854 = vshrl.u32 %v853, 7
    %v855 = vsub.s32 %v852, %v854
    %v856 = vrot.slane %v848, %v855
    %v857 = vcombine.high %v856, %v856
    %v859 = vunpack.c.l.s4 1966171168
    %v860 = vunpack.c.0.s8 %v859
    %v861 = vlaneseq
    %v862 = vshrl.u32 %v861, 7
    %v863 = vsub.s32 %v860, %v862
    %v864 = vrot.slane %v856, %v863
    %v866 = vunpack.c.l.s4 1966171168
    %v867 = vunpack.c.0.s8 %v866
    %v868 = vlaneseq
    %v869 = vshrl.u32 %v868, 7
    %v870 = vsub.s32 %v867, %v869
    %v871 = vrot.slane %v857, %v870
    %v872 = vcombine.high %v864, %v864
    %v873 = vcombine.high %v871, %v871
    %878 = vst [vmem:[#allocation8] sm:$0x1] %v864
    %879 = vst [vmem:[#allocation8 + $0x1] sm:$0x1] %v871
    %880 = vst [vmem:[#allocation8 + $0x2] sm:$0x1] %v872
    %881 = vst [vmem:[#allocation8 + $0x3] sm:$0x1] %v873
    // Predicated region
    $region34: #{tpu_custom_call.1} parent=1 // pred_check
      _
    $region35: #{tpu_custom_call.1} parent=1 // pred_check_branch
      %883 = sbr.rel (0) target = $region37
    $region36: #{tpu_custom_call.1} parent=1 // pred_region
      %s885 = ssub.s32 64, 16
      %886 = vsyncadd [#allocation4], %s885
      %s887 = sshll.u32 [#allocation8], 4
      %s888 = int_to_ptr.vmem [resolvable:$true] %s887
      %893 = dma.vmem_to_hbm [thread:$0]  %s888, 16, %s5, [#allocation4], 16, 16, 1
    $region37: #{tpu_custom_call.1} parent=1 // pred_fallthru
      _
    // Predicated region
    $region38: #{tpu_custom_call.1} parent=1 // pred_check
      _
    $region39: #{tpu_custom_call.1} parent=1 // pred_check_branch
      %895 = sbr.rel (0) target = $region41
    $region40: #{tpu_custom_call.1} parent=1 // pred_region
      %896 = dma.done [#allocation4], 64
    $region41: #{tpu_custom_call.1} parent=1 // pred_fallthru
      _
    %897 = vsyncpa [#allocation3], 1
    %898 = vsyncpa [#allocation6], 1
    %899 = vsyncpa [#allocation4], 1

</llo_original>
